<compile_context>
chip_gen: v7x
topology: tpu7x:2x2x1
jax: 0.10.0
libtpu: 0.0.40
codegen_flags: <defaults>
</compile_context>

<pallas_src>
import jax
import jax.numpy as jnp
import numpy as np
from jax.experimental import pallas as pl
from jax.experimental.pallas import tpu as pltpu


def _round_up(x, m):
    return (x + m - 1) // m * m


# --------------------------------------------------------------------------
# Kernel: two fused MXU matmuls + two fused bias adds, one lane-dense store.
# --------------------------------------------------------------------------
def dual_kernel(x_ref, we_ref, be_ref, wd_ref, bd_ref, o_ref):
    # Encoder: [Bp, Din_tot] @ [Din_tot, 2H] + [1, 2H]  ->  [e1 || e2]
    e = (jnp.dot(x_ref[...], we_ref[...], preferred_element_type=jnp.float32)
         + be_ref[...])
    # Decoder: [Bp, 2H] @ [2H, Dout_pad] + [1, Dout_pad] -> [o1||o2||o3||o4|0pad]
    o_ref[...] = (jnp.dot(e, wd_ref[...], preferred_element_type=jnp.float32)
                  + bd_ref[...]).astype(o_ref.dtype)


# --------------------------------------------------------------------------
# Parameter init (mimics nn.Linear uniform init; weights stored [in, out]).
# --------------------------------------------------------------------------
def init_params(key, input_dim, output_dim, hidden_dim):
    def linear(k, fan_in, fan_out):
        kw, kb = jax.random.split(k)
        bound = 1.0 / np.sqrt(fan_in)
        w = jax.random.uniform(kw, (fan_in, fan_out), jnp.float32, -bound, bound)
        b = jax.random.uniform(kb, (1, fan_out), jnp.float32, -bound, bound)
        return w, b

    k1, k2, k3, k4, k5 = jax.random.split(key, 5)
    w11, b11 = linear(k1, input_dim, hidden_dim)    # fc1_1
    w12, b12 = linear(k2, hidden_dim, input_dim)    # fc1_2
    w21, b21 = linear(k3, output_dim, hidden_dim)   # fc2_1
    w22, b22 = linear(k4, hidden_dim, output_dim)   # fc2_2
    wc,  bc  = linear(k5, hidden_dim, hidden_dim)   # conv (nn.Linear H->H)
    return dict(w11=w11, b11=b11, w12=w12, b12=b12,
                w21=w21, b21=b21, w22=w22, b22=b22,
                wc=wc, bc=bc)


# --------------------------------------------------------------------------
# One-time packing of per-layer params into the two fused weight matrices.
# Decoder weight/bias are lane-padded to a multiple of 128 columns.
# --------------------------------------------------------------------------
def pack_params(params, input_dim, output_dim, hidden_dim):
    H = hidden_dim
    din_tot = input_dim + output_dim
    dout_raw = input_dim + output_dim + 2 * H
    dout_pad = _round_up(dout_raw, 128)

    # Block-diagonal encoder weight: [din_tot, 2H]
    we = jnp.zeros((din_tot, 2 * H), jnp.float32)
    we = we.at[:input_dim, :H].set(params["w11"])
    we = we.at[input_dim:, H:].set(params["w21"])
    be = jnp.concatenate([params["b11"], params["b21"]], axis=1)        # [1, 2H]

    # Packed (and lane-padded) decoder weight: [2H, dout_pad]
    wd = jnp.zeros((2 * H, dout_pad), jnp.float32)
    wd = wd.at[:H, :input_dim].set(params["w12"])                               # o1
    wd = wd.at[H:, input_dim:input_dim + output_dim].set(params["w22"])         # o2
    wd = wd.at[:H, input_dim + output_dim:input_dim + output_dim + H].set(
        params["wc"])                                                           # o3
    wd = wd.at[H:, input_dim + output_dim + H:dout_raw].set(
        jnp.eye(H, dtype=jnp.float32))                                          # o4 = e2

    bd = jnp.zeros((1, dout_pad), jnp.float32)
    bd = bd.at[:, :input_dim].set(params["b12"])
    bd = bd.at[:, input_dim:input_dim + output_dim].set(params["b22"])
    bd = bd.at[:, input_dim + output_dim:input_dim + output_dim + H].set(params["bc"])
    return we, be, wd, bd


# --------------------------------------------------------------------------
# Wrapper: pack, run a single gridless pallas_call, slice the output slab.
# --------------------------------------------------------------------------
def simple_dual_forward(x1, x2, params):
    B, input_dim = x1.shape
    output_dim = x2.shape[1]
    H = params["w11"].shape[1]
    din_tot = input_dim + output_dim
    dout_raw = input_dim + output_dim + 2 * H
    Bp = _round_up(B, 8)                         # sublane alignment

    x = jnp.concatenate([x1, x2], axis=1)        # [B, din_tot]
    if Bp != B:
        x = jnp.pad(x, ((0, Bp - B), (0, 0)))

    we, be, wd, bd = pack_params(params, input_dim, output_dim, H)
    dout_pad = wd.shape[1]

    vmem = pltpu.MemorySpace.VMEM
    flops = 2 * Bp * din_tot * (2 * H) + 2 * Bp * (2 * H) * dout_pad
    bytes_accessed = 4 * (x.size + we.size + be.size + wd.size + bd.size
                          + Bp * dout_pad)

    slab = pl.pallas_call(
        dual_kernel,
        out_shape=jax.ShapeDtypeStruct((Bp, dout_pad), jnp.float32),
        in_specs=[pl.BlockSpec(memory_space=vmem)] * 5,
        out_specs=pl.BlockSpec(memory_space=vmem),
        cost_estimate=pl.CostEstimate(flops=flops, transcendentals=0,
                                      bytes_accessed=bytes_accessed),
    )(x, we, be, wd, bd)

    slab = slab[:B]
    o1 = slab[:, :input_dim]
    o2 = slab[:, input_dim:input_dim + output_dim]
    o3 = slab[:, input_dim + output_dim:input_dim + output_dim + H]
    o4 = slab[:, input_dim + output_dim + H:dout_raw]
    return o1, o2, o3, o4


# --------------------------------------------------------------------------
# Pure-JAX reference (inference-mode dropout = identity).
# --------------------------------------------------------------------------
def simple_dual_reference(x1, x2, params):
    e1 = x1 @ params["w11"] + params["b11"]
    e2 = x2 @ params["w21"] + params["b21"]
    o1 = e1 @ params["w12"] + params["b12"]
    o2 = e2 @ params["w22"] + params["b22"]
    o3 = e1 @ params["wc"] + params["bc"]
    o4 = e2
    return o1, o2, o3, o4


if __name__ == "__main__":
    B, input_dim, output_dim, hidden_dim = 8, 32, 24, 16

    key = jax.random.PRNGKey(0)
    kx1, kx2, kp = jax.random.split(key, 3)
    x1 = jax.random.normal(kx1, (B, input_dim), jnp.float32)
    x2 = jax.random.normal(kx2, (B, output_dim), jnp.float32)
    params = init_params(kp, input_dim, output_dim, hidden_dim)

    fwd = jax.jit(simple_dual_forward)
    outs = jax.block_until_ready(fwd(x1, x2, params))

    refs = simple_dual_reference(x1, x2, params)
    for o, r in zip(outs, refs):
        np.testing.assert_allclose(np.asarray(o), np.asarray(r),
                                   rtol=1e-5, atol=1e-5)

    print("KERNEL_OK")
</pallas_src>

<mosaic_0001>
module attributes {stable_mosaic.version = 11 : i64} {
  func.func @dual_kernel(%arg0: memref<8x56xf32, #tpu.memory_space<vmem>>, %arg1: memref<56x32xf32, #tpu.memory_space<vmem>>, %arg2: memref<1x32xf32, #tpu.memory_space<vmem>>, %arg3: memref<32x128xf32, #tpu.memory_space<vmem>>, %arg4: memref<1x128xf32, #tpu.memory_space<vmem>>, %arg5: memref<8x128xf32, #tpu.memory_space<vmem>>) attributes {dimension_semantics = [], scalar_prefetch = 0 : i64, scratch_operands = 0 : i64, tpu.core_type = #tpu.core_type<tc>} {
    %c0 = arith.constant 0 : index
    %c0_0 = arith.constant 0 : index
    %0 = vector.load %arg0[%c0, %c0_0] : memref<8x56xf32, #tpu.memory_space<vmem>>, vector<8x56xf32>
    %c0_1 = arith.constant 0 : index
    %c0_2 = arith.constant 0 : index
    %1 = vector.load %arg1[%c0_1, %c0_2] : memref<56x32xf32, #tpu.memory_space<vmem>>, vector<56x32xf32>
    %cst = arith.constant dense<0.000000e+00> : vector<8x32xf32>
    %2 = tpu.matmul %0, %1, %cst {dimension_numbers = #tpu.dot_dimension_numbers<[1], [0], [0], [1], [0, 0, 1, 1], [], []>} : vector<8x56xf32>, vector<56x32xf32>, vector<8x32xf32> -> vector<8x32xf32>
    %c0_3 = arith.constant 0 : index
    %c0_4 = arith.constant 0 : index
    %3 = vector.load %arg2[%c0_3, %c0_4] : memref<1x32xf32, #tpu.memory_space<vmem>>, vector<1x32xf32>
    %4 = vector.broadcast %3 : vector<1x32xf32> to vector<8x32xf32>
    %5 = arith.addf %2, %4 : vector<8x32xf32>
    %c0_5 = arith.constant 0 : index
    %c0_6 = arith.constant 0 : index
    %6 = vector.load %arg3[%c0_5, %c0_6] : memref<32x128xf32, #tpu.memory_space<vmem>>, vector<32x128xf32>
    %cst_7 = arith.constant dense<0.000000e+00> : vector<8x128xf32>
    %7 = tpu.matmul %5, %6, %cst_7 {dimension_numbers = #tpu.dot_dimension_numbers<[1], [0], [0], [1], [0, 0, 1, 1], [], []>} : vector<8x32xf32>, vector<32x128xf32>, vector<8x128xf32> -> vector<8x128xf32>
    %c0_8 = arith.constant 0 : index
    %c0_9 = arith.constant 0 : index
    %8 = vector.load %arg4[%c0_8, %c0_9] : memref<1x128xf32, #tpu.memory_space<vmem>>, vector<1x128xf32>
    %9 = vector.broadcast %8 : vector<1x128xf32> to vector<8x128xf32>
    %10 = arith.addf %7, %9 : vector<8x128xf32>
    %c0_10 = arith.constant 0 : index
    %c0_11 = arith.constant 0 : index
    %11 = vector.load %arg5[%c0_10, %c0_11] : memref<8x128xf32, #tpu.memory_space<vmem>>, vector<8x128xf32>
    tpu.vector_store %arg5[%c0_10, %c0_11], %10 {strides = array<i32>} : memref<8x128xf32, #tpu.memory_space<vmem>>, vector<8x128xf32>,
    return
  }
}

</mosaic_0001>

<llo_original>
// kernel: simple_dual_forward.1
$region0: #{simple_dual_forward.1}
  #allocation0 [shape = 'u32[]', space=smem, size = 0x4, offset = 0x4, fixed_abs, tag = 'smem constant byte address 0x4 - core index']
  #allocation1 [shape = 'u32[144,128]{1,0:T(1,128)}', space=vmem, size = 0x12000, scoped, tag = 'internal scratch']
  %s0 = inlined_call_operand.vmem [shape: f32[8,56], index: 0, kind: input, shape index: {}]
  %s1 = inlined_call_operand.vmem [shape: f32[56,32], index: 1, kind: input, shape index: {}]
  %s2 = inlined_call_operand.vmem [shape: f32[1,32], index: 2, kind: input, shape index: {}]
  %s3 = inlined_call_operand.vmem [shape: f32[32,128], index: 3, kind: input, shape index: {}]
  %s4 = inlined_call_operand.vmem [shape: f32[1,128], index: 4, kind: input, shape index: {}]
  %s5 = inlined_call_operand.vmem [shape: f32[8,128], index: 5, kind: output, shape index: {}]
  %s6 = sld [smem:[#allocation0]]
  $region30: #{simple_dual_forward.1} parent=0
    _
  %s8 = ssub.s32 1, %s6
  %s9 = scalar_select 0, %s8, %s6
  // Predicated region
  $region2: #{simple_dual_forward.1} parent=0 // pred_check
    _
  $region3: #{simple_dual_forward.1} parent=0 // pred_check_branch
    %11 = sbr.rel (0) target = $region5
  $region4: #{simple_dual_forward.1} parent=0 // pred_region
    _
  $region5: #{simple_dual_forward.1} parent=0 // pred_fallthru
    _
  // Predicated region
  $region6: #{simple_dual_forward.1} parent=0 // pred_check
    _
  $region7: #{simple_dual_forward.1} parent=0 // pred_check_branch
    %13 = sbr.rel (0) target = $region9
  $region8: #{simple_dual_forward.1} parent=0 // pred_region
    _
  $region9: #{simple_dual_forward.1} parent=0 // pred_fallthru
    _
  // Predicated region
  $region10: #{simple_dual_forward.1} parent=0 // pred_check
    _
  $region11: #{simple_dual_forward.1} parent=0 // pred_check_branch
    %15 = sbr.rel (0) target = $region13
  $region12: #{simple_dual_forward.1} parent=0 // pred_region
    _
  $region13: #{simple_dual_forward.1} parent=0 // pred_fallthru
    _
  // Predicated region
  $region14: #{simple_dual_forward.1} parent=0 // pred_check
    _
  $region15: #{simple_dual_forward.1} parent=0 // pred_check_branch
    %17 = sbr.rel (0) target = $region17
  $region16: #{simple_dual_forward.1} parent=0 // pred_region
    _
  $region17: #{simple_dual_forward.1} parent=0 // pred_fallthru
    _
  // Predicated region
  $region18: #{simple_dual_forward.1} parent=0 // pred_check
    _
  $region19: #{simple_dual_forward.1} parent=0 // pred_check_branch
    %19 = sbr.rel (0) target = $region21
  $region20: #{simple_dual_forward.1} parent=0 // pred_region
    _
  $region21: #{simple_dual_forward.1} parent=0 // pred_fallthru
    _
  %v20 = vld [vmem:[%s0] sm:$0xff]
  %v21 = vld [vmem:[%s1] sm:$0xff]
  %v22 = vld [vmem:[%s1 + $0x8] sm:$0xff]
  %v23 = vld [vmem:[%s1 + $0x10] sm:$0xff]
  %v24 = vld [vmem:[%s1 + $0x18] sm:$0xff]
  %v25 = vld [vmem:[%s1 + $0x20] sm:$0xff]
  %v26 = vld [vmem:[%s1 + $0x28] sm:$0xff]
  %v27 = vld [vmem:[%s1 + $0x30] sm:$0xff]
  %v28 = vld [vmem:[%s2] sm:$0x1]
  %v30 = vlaneseq
  %v31 = vshrl.u32 %v30, 7
  %v32 = vsub.s32 0, %v31
  %v33 = vrot.slane %v28, %v32
  %vm35 = vcmask 457728
  %v37 = vsel %vm35, %v20, 0
  %39 = vmatprep.subr.mxu0 0.0
  %40 = vmatpush1.msra.mxu0 %v21
  %41 = vmatprep.subr.mxu0 0.0
  %42 = vmatpush1.msra.mxu0 %v22
  %43 = vmatprep.subr.mxu0 0.0
  %44 = vmatpush1.msra.mxu0 %v23
  %45 = vmatprep.subr.mxu0 0.0
  %46 = vmatpush1.msra.mxu0 %v24
  %47 = vmatprep.subr.mxu0 0.0
  %48 = vmatpush1.msra.mxu0 %v25
  %49 = vmatprep.subr.mxu0 0.0
  %50 = vmatpush1.msra.mxu0 %v26
  %51 = vmatprep.subr.mxu0 0.0
  %52 = vmatpush1.msra.mxu0 %v27
  %53 = vmatprep.subr.mxu0 0.0
  %54 = vmatpush1.msra.mxu0 0.0
  %55 = vmatprep.subr.mxu0 0.0
  %56 = vmatpush1.msra.mxu0 0.0
  %57 = vmatprep.subr.mxu0 0.0
  %58 = vmatpush1.msra.mxu0 0.0
  %59 = vmatprep.subr.mxu0 0.0
  %60 = vmatpush1.msra.mxu0 0.0
  %61 = vmatprep.subr.mxu0 0.0
  %62 = vmatpush1.msra.mxu0 0.0
  %63 = vmatprep.subr.mxu0 0.0
  %64 = vmatpush1.msra.mxu0 0.0
  %65 = vmatprep.subr.mxu0 0.0
  %66 = vmatpush1.msra.mxu0 0.0
  %67 = vmatprep.subr.mxu0 0.0
  %68 = vmatpush1.msra.mxu0 0.0
  %69 = vmatprep.subr.mxu0 0.0
  %70 = vmatpush1.msra.mxu0 0.0
  %71 = vmatprep.subr.mxu0 0.0
  %72 = vmatpush1.msra.mxu0 0.0
  %73 = vmatprep.subr.mxu0 0.0
  %74 = vmatpush1.msra.mxu0 0.0
  %75 = vmatprep.subr.mxu0 0.0
  %76 = vmatpush1.msra.mxu0 0.0
  %77 = vmatprep.subr.mxu0 0.0
  %78 = vmatpush1.msra.mxu0 0.0
  %79 = vmatprep.subr.mxu0 0.0
  %80 = vmatpush1.msra.mxu0 0.0
  %81 = vmatprep.subr.mxu0 0.0
  %82 = vmatpush1.msra.mxu0 0.0
  %83 = vmatprep.subr.mxu0 0.0
  %84 = vmatpush1.msra.mxu0 0.0
  %85 = vmatprep.subr.mxu0 0.0
  %86 = vmatpush1.msra.mxu0 0.0
  %87 = vmatprep.subr.mxu0 0.0
  %88 = vmatpush1.msra.mxu0 0.0
  %89 = vmatprep.subr.mxu0 0.0
  %90 = vmatpush1.msra.mxu0 0.0
  %91 = vmatprep.subr.mxu0 0.0
  %92 = vmatpush1.msra.mxu0 0.0
  %93 = vmatprep.subr.mxu0 0.0
  %94 = vmatpush1.msra.mxu0 0.0
  %95 = vmatprep.subr.mxu0 0.0
  %96 = vmatpush1.msra.mxu0 0.0
  %97 = vmatprep.subr.mxu0 0.0
  %98 = vmatpush1.msra.mxu0 0.0
  %99 = vmatprep.subr.mxu0 0.0
  %100 = vmatpush1.msra.mxu0 0.0
  %101 = vmatprep.subr.mxu0 0.0
  %102 = vmatpush1.msra.mxu0 0.0
  %103 = vmatprep.mubr.f32.mxu0 0.0
  %104 = vmatmul.mubr.f32.gmra.mrb[0].mxu0 %v37
  %v105 = vpop.f32.mrb[0].mxu0
  %v106 = vadd.f32 %v33, %v105
  %v107 = vpop.f32.mrb[0].mxu0
  %108 = vdwg.mxu0
  %v109 = vld [vmem:[%s3] sm:$0xff]
  %v110 = vld [vmem:[%s3 + $0x8] sm:$0xff]
  %v111 = vld [vmem:[%s3 + $0x10] sm:$0xff]
  %v112 = vld [vmem:[%s3 + $0x18] sm:$0xff]
  %v113 = vld [vmem:[%s4] sm:$0x1]
  %v115 = vlaneseq
  %v116 = vshrl.u32 %v115, 7
  %v117 = vsub.s32 0, %v116
  %v118 = vrot.slane %v113, %v117
  %vm120 = vcmask 261120
  %v122 = vsel %vm120, %v106, 0
  %124 = vmatprep.subr.mxu0 0.0
  %125 = vmatpush1.msra.mxu0 %v109
  %126 = vmatprep.subr.mxu0 0.0
  %127 = vmatpush1.msra.mxu0 %v110
  %128 = vmatprep.subr.mxu0 0.0
  %129 = vmatpush1.msra.mxu0 %v111
  %130 = vmatprep.subr.mxu0 0.0
  %131 = vmatpush1.msra.mxu0 %v112
  %132 = vmatprep.subr.mxu0 0.0
  %133 = vmatpush1.msra.mxu0 0.0
  %134 = vmatprep.subr.mxu0 0.0
  %135 = vmatpush1.msra.mxu0 0.0
  %136 = vmatprep.subr.mxu0 0.0
  %137 = vmatpush1.msra.mxu0 0.0
  %138 = vmatprep.subr.mxu0 0.0
  %139 = vmatpush1.msra.mxu0 0.0
  %140 = vmatprep.subr.mxu0 0.0
  %141 = vmatpush1.msra.mxu0 0.0
  %142 = vmatprep.subr.mxu0 0.0
  %143 = vmatpush1.msra.mxu0 0.0
  %144 = vmatprep.subr.mxu0 0.0
  %145 = vmatpush1.msra.mxu0 0.0
  %146 = vmatprep.subr.mxu0 0.0
  %147 = vmatpush1.msra.mxu0 0.0
  %148 = vmatprep.subr.mxu0 0.0
  %149 = vmatpush1.msra.mxu0 0.0
  %150 = vmatprep.subr.mxu0 0.0
  %151 = vmatpush1.msra.mxu0 0.0
  %152 = vmatprep.subr.mxu0 0.0
  %153 = vmatpush1.msra.mxu0 0.0
  %154 = vmatprep.subr.mxu0 0.0
  %155 = vmatpush1.msra.mxu0 0.0
  %156 = vmatprep.subr.mxu0 0.0
  %157 = vmatpush1.msra.mxu0 0.0
  %158 = vmatprep.subr.mxu0 0.0
  %159 = vmatpush1.msra.mxu0 0.0
  %160 = vmatprep.subr.mxu0 0.0
  %161 = vmatpush1.msra.mxu0 0.0
  %162 = vmatprep.subr.mxu0 0.0
  %163 = vmatpush1.msra.mxu0 0.0
  %164 = vmatprep.subr.mxu0 0.0
  %165 = vmatpush1.msra.mxu0 0.0
  %166 = vmatprep.subr.mxu0 0.0
  %167 = vmatpush1.msra.mxu0 0.0
  %168 = vmatprep.subr.mxu0 0.0
  %169 = vmatpush1.msra.mxu0 0.0
  %170 = vmatprep.subr.mxu0 0.0
  %171 = vmatpush1.msra.mxu0 0.0
  %172 = vmatprep.subr.mxu0 0.0
  %173 = vmatpush1.msra.mxu0 0.0
  %174 = vmatprep.subr.mxu0 0.0
  %175 = vmatpush1.msra.mxu0 0.0
  %176 = vmatprep.subr.mxu0 0.0
  %177 = vmatpush1.msra.mxu0 0.0
  %178 = vmatprep.subr.mxu0 0.0
  %179 = vmatpush1.msra.mxu0 0.0
  %180 = vmatprep.subr.mxu0 0.0
  %181 = vmatpush1.msra.mxu0 0.0
  %182 = vmatprep.subr.mxu0 0.0
  %183 = vmatpush1.msra.mxu0 0.0
  %184 = vmatprep.subr.mxu0 0.0
  %185 = vmatpush1.msra.mxu0 0.0
  %186 = vmatprep.subr.mxu0 0.0
  %187 = vmatpush1.msra.mxu0 0.0
  %188 = vmatprep.mubr.f32.mxu0 0.0
  %189 = vmatmul.mubr.f32.gmra.mrb[0].mxu0 %v122
  %v190 = vpop.f32.mrb[0].mxu0
  %v191 = vadd.f32 %v118, %v190
  %v192 = vpop.f32.mrb[0].mxu0
  %193 = vdwg.mxu0
  %194 = vst [vmem:[%s5] sm:$0xff] %v191
  // Predicated region
  $region22: #{simple_dual_forward.1} parent=0 // pred_check
    _
  $region23: #{simple_dual_forward.1} parent=0 // pred_check_branch
    %196 = sbr.rel (0) target = $region25
  $region24: #{simple_dual_forward.1} parent=0 // pred_region
    _
  $region25: #{simple_dual_forward.1} parent=0 // pred_fallthru
    _
  // Predicated region
  $region26: #{simple_dual_forward.1} parent=0 // pred_check
    _
  $region27: #{simple_dual_forward.1} parent=0 // pred_check_branch
    %198 = sbr.rel (0) target = $region29
  $region28: #{simple_dual_forward.1} parent=0 // pred_region
    _
  $region29: #{simple_dual_forward.1} parent=0 // pred_fallthru
    _

</llo_original>
